<compile_context>
chip_gen: v7x
topology: tpu7x:2x2x1
jax: 0.10.0
libtpu: 0.0.40
codegen_flags: <defaults>
</compile_context>

<pallas_src>
import jax
import jax.numpy as jnp
from jax import lax
from jax.experimental import pallas as pl
from jax.experimental.pallas import tpu as pltpu


def _round_up(n: int, m: int) -> int:
    return ((n + m - 1) // m) * m


# ----------------------------------------------------------------------------
# Shared transposed epilogue: head matmul + prediction + masked per-row loss.
# feat_t : [hidden, tile_b]     features, batch along lanes
# y_t    : [num_asp, tile_b]    genre targets (transposed)
# w_t    : [head_rows, hidden]  rows = [W^T | ones (pred) | zero pad]
# b_col  : [head_rows, 1]       [b | 0 | 0...]
# Writes a single lane-dense [2, tile_b] block:
#   row 0 = prediction, row 1 = per-sample interpretation loss (padded rows 0).
# ----------------------------------------------------------------------------
def _head_epilogue(feat_t, y_t, w_t, b_col, out_ref, tile, *,
                   tile_b, num_asp, true_batch):
    s_t = jnp.dot(w_t, feat_t, preferred_element_type=jnp.float32) + b_col
    pred_row = s_t[num_asp:num_asp + 1, :]                       # [1, tile_b]
    diff = s_t[:num_asp, :] - y_t                                # [A, tile_b]
    col = tile * tile_b + lax.broadcasted_iota(jnp.int32, (1, tile_b), 1)
    valid = (col < true_batch).astype(jnp.float32)               # [1, tile_b]
    loss_row = jnp.sum(diff * diff, axis=0, keepdims=True) * valid
    # one merged lane-dense store (no masked width-1 column stores)
    out_ref[...] = jnp.concatenate([pred_row, loss_row], axis=0)


# ----------------------------------------------------------------------------
# Resident-table kernel: tables live in VMEM, gather = one-hot matmul on MXU.
# ----------------------------------------------------------------------------
def _make_resident_kernel(tile_b, num_asp, true_batch, u_rows, i_rows):
    def kernel(ids_ref, y_ref, w_ref, b_ref, uemb_ref, iemb_ref, out_ref):
        tile = pl.program_id(0)
        ids = ids_ref[...]                                       # [2, tile_b]
        uids = ids[0:1, :]
        iids = ids[1:2, :]
        # one-hot gather (MXU); no per-row DMAs, no scalar loops
        u_oh = (lax.broadcasted_iota(jnp.int32, (u_rows, tile_b), 0)
                == uids).astype(jnp.float32)                     # [U, tile_b]
        i_oh = (lax.broadcasted_iota(jnp.int32, (i_rows, tile_b), 0)
                == iids).astype(jnp.float32)                     # [I, tile_b]
        u_t = jnp.dot(uemb_ref[...], u_oh,
                      preferred_element_type=jnp.float32)        # [H, tile_b]
        i_t = jnp.dot(iemb_ref[...], i_oh,
                      preferred_element_type=jnp.float32)        # [H, tile_b]
        feat_t = u_t * i_t
        _head_epilogue(feat_t, y_ref[...], w_ref[...], b_ref[...], out_ref,
                       tile, tile_b=tile_b, num_asp=num_asp,
                       true_batch=true_batch)
    return kernel


# ----------------------------------------------------------------------------
# Fallback kernel (tables too large for VMEM): fused per-row DMA gather,
# double-buffered across grid steps, one aggregate wait per table.
# ----------------------------------------------------------------------------
def _make_dma_kernel(tile_b, num_asp, true_batch):
    def kernel(uids_ref, iids_ref,               # scalar-prefetch ids (SMEM)
               y_ref, w_ref, b_ref,              # VMEM blocks
               uemb_hbm, iemb_hbm,               # raw HBM tables (pl.ANY)
               out_ref,                          # [2, tile_b]
               ubuf, ibuf, sem):                 # (2*tile_b, H) x2, sem (2,2)
        tile = pl.program_id(0)
        n_tiles = pl.num_programs(0)
        slot = tile % 2

        def issue(t, s):
            base = t * tile_b
            dst0 = s * tile_b

            def body(r, carry):
                uid = uids_ref[base + r]
                iid = iids_ref[base + r]
                pltpu.make_async_copy(uemb_hbm.at[uid], ubuf.at[dst0 + r],
                                      sem.at[0, s]).start()
                pltpu.make_async_copy(iemb_hbm.at[iid], ibuf.at[dst0 + r],
                                      sem.at[1, s]).start()
                return carry

            lax.fori_loop(0, tile_b, body, 0, unroll=8)

        # prime slot 0 on the very first tile
        @pl.when(tile == 0)
        def _():
            issue(0, 0)

        # cross-tile prefetch: issue tile+1's rows into the other slot BEFORE
        # waiting on the current slot, so the DMAs overlap wait + compute
        @pl.when(tile + 1 < n_tiles)
        def _():
            issue(tile + 1, 1 - slot)

        # one aggregate wait per table: descriptor covers the whole
        # (tile_b, hidden) half-buffer == total bytes of the tile_b row copies
        cur = pl.ds(slot * tile_b, tile_b)
        pltpu.make_async_copy(ubuf.at[cur], ubuf.at[cur], sem.at[0, slot]).wait()
        pltpu.make_async_copy(ibuf.at[cur], ibuf.at[cur], sem.at[1, slot]).wait()

        feat = ubuf[cur, :] * ibuf[cur, :]                       # [tile_b, H]
        _head_epilogue(feat.T, y_ref[...], w_ref[...], b_ref[...], out_ref,
                       tile, tile_b=tile_b, num_asp=num_asp,
                       true_batch=true_batch)
    return kernel


# ----------------------------------------------------------------------------
# Wrapper
# ----------------------------------------------------------------------------
def interpretable_model_forward(x, y, user_emb, item_emb, w, b, *,
                                tile_b=None,
                                resident_vmem_budget=32 * 2**20):
    """Forward pass of InterpretableModel.

    x: [batch, 2] int32 (user id, item id)
    y: [batch, num_asp] float32
    returns: (prediction [batch], int_loss scalar)
    """
    batch = int(x.shape[0])
    hidden = int(user_emb.shape[1])
    num_asp = int(y.shape[1])
    num_users = int(user_emb.shape[0])
    num_items = int(item_emb.shape[0])
    head_rows = _round_up(num_asp + 1, 8)    # [W^T | ones | zero pad]

    # ---- batch tiling: lane-dense tiles (multiple of 128), >= 2 tiles ------
    if tile_b is None:
        padded = _round_up(batch, 256)
        cap = min(1024, padded // 2)
        cands = [t for t in range(128, cap + 1, 128) if padded % t == 0]
        even = [t for t in cands if (padded // t) % 2 == 0]
        tile_b = max(even) if even else max(cands)
    else:
        tile_b = _round_up(max(int(tile_b), 128), 128)
        padded = max(_round_up(batch, tile_b), 2 * tile_b)
    n_tiles = padded // tile_b
    pad = padded - batch

    # ---- operands shared by both paths (transposed / lane-dense layouts) ---
    y_t = jnp.pad(y.astype(jnp.float32), ((0, pad), (0, 0))).T      # [A, padded]
    w_t = jnp.concatenate(
        [w.astype(jnp.float32).T,                                   # W^T rows
         jnp.ones((1, hidden), jnp.float32),                        # pred row
         jnp.zeros((head_rows - num_asp - 1, hidden), jnp.float32)], axis=0)
    b_col = jnp.concatenate(
        [b.astype(jnp.float32),
         jnp.zeros((head_rows - num_asp,), jnp.float32)]).reshape(head_rows, 1)
    uids = jnp.pad(x[:, 0].astype(jnp.int32), (0, pad))             # pad -> id 0
    iids = jnp.pad(x[:, 1].astype(jnp.int32), (0, pad))

    # ---- choose gather strategy (VMEM budget gate, v7x-safe) ---------------
    u_rows = _round_up(num_users, 128)
    i_rows = _round_up(num_items, 128)
    table_bytes = (u_rows + i_rows) * hidden * 4
    onehot_bytes = (u_rows + i_rows) * tile_b * 4
    block_bytes = (2 * tile_b * (num_asp + 2 + 2) * 4
                   + 2 * head_rows * (hidden + 1) * 4)
    inter_bytes = 2 * onehot_bytes + (3 * hidden + 2 * head_rows) * tile_b * 4
    resident_est = 2 * table_bytes + block_bytes + inter_bytes      # 2x = dbl-buf
    use_resident = resident_est <= resident_vmem_budget

    if use_resident:
        # ---------------- resident-table path (default) --------------------
        uemb_t = jnp.pad(user_emb.astype(jnp.float32),
                         ((0, u_rows - num_users), (0, 0))).T       # [H, U]
        iemb_t = jnp.pad(item_emb.astype(jnp.float32),
                         ((0, i_rows - num_items), (0, 0))).T       # [H, I]
        ids_t = jnp.stack([uids, iids], axis=0)                     # [2, padded]

        kernel = _make_resident_kernel(tile_b, num_asp, batch, u_rows, i_rows)
        flops = (2 * hidden * (u_rows + i_rows) * padded            # gathers
                 + 2 * hidden * head_rows * padded                  # head
                 + padded * (hidden + 4 * num_asp))
        bytes_accessed = 4 * ((u_rows + i_rows) * hidden
                              + padded * (num_asp + 2 + 2)
                              + head_rows * (hidden + 1))

        grid_spec = pltpu.PrefetchScalarGridSpec(
            num_scalar_prefetch=0,
            grid=(n_tiles,),
            in_specs=[
                pl.BlockSpec((2, tile_b), lambda i: (0, i)),           # ids^T
                pl.BlockSpec((num_asp, tile_b), lambda i: (0, i)),     # y^T
                pl.BlockSpec((head_rows, hidden), lambda i: (0, 0)),   # W'
                pl.BlockSpec((head_rows, 1), lambda i: (0, 0)),        # b'
                pl.BlockSpec((hidden, u_rows), lambda i: (0, 0)),      # U^T
                pl.BlockSpec((hidden, i_rows), lambda i: (0, 0)),      # I^T
            ],
            out_specs=pl.BlockSpec((2, tile_b), lambda i: (0, i)),
        )
        out = pl.pallas_call(
            kernel,
            grid_spec=grid_spec,
            out_shape=jax.ShapeDtypeStruct((2, padded), jnp.float32),
            compiler_params=pltpu.CompilerParams(
                dimension_semantics=("parallel",),      # both v7x TCs engaged
                vmem_limit_bytes=48 * 2**20),           # < 64 MiB v7x physical
            cost_estimate=pl.CostEstimate(flops=flops, transcendentals=0,
                                          bytes_accessed=bytes_accessed),
        )(ids_t, y_t, w_t, b_col, uemb_t, iemb_t)
    else:
        # ---------------- DMA-gather fallback (tables too big) -------------
        kernel = _make_dma_kernel(tile_b, num_asp, batch)
        flops = 2 * hidden * head_rows * padded + padded * (hidden + 4 * num_asp)
        bytes_accessed = 4 * (2 * padded * hidden
                              + padded * (num_asp + 2 + 2)
                              + head_rows * (hidden + 1))

        grid_spec = pltpu.PrefetchScalarGridSpec(
            num_scalar_prefetch=2,
            grid=(n_tiles,),
            in_specs=[
                pl.BlockSpec((num_asp, tile_b), lambda i, uu, ii: (0, i)),   # y^T
                pl.BlockSpec((head_rows, hidden), lambda i, uu, ii: (0, 0)), # W'
                pl.BlockSpec((head_rows, 1), lambda i, uu, ii: (0, 0)),      # b'
                pl.BlockSpec(memory_space=pl.ANY),   # user embedding table (HBM)
                pl.BlockSpec(memory_space=pl.ANY),   # item embedding table (HBM)
            ],
            out_specs=pl.BlockSpec((2, tile_b), lambda i, uu, ii: (0, i)),
            scratch_shapes=[
                pltpu.VMEM((2 * tile_b, hidden), jnp.float32),   # user rows x2
                pltpu.VMEM((2 * tile_b, hidden), jnp.float32),   # item rows x2
                pltpu.SemaphoreType.DMA((2, 2)),                 # [table, slot]
            ],
        )
        out = pl.pallas_call(
            kernel,
            grid_spec=grid_spec,
            out_shape=jax.ShapeDtypeStruct((2, padded), jnp.float32),
            compiler_params=pltpu.CompilerParams(
                # cross-tile manual prefetch needs sequential grid execution
                dimension_semantics=("arbitrary",),
                vmem_limit_bytes=48 * 2**20),
            cost_estimate=pl.CostEstimate(flops=flops, transcendentals=0,
                                          bytes_accessed=bytes_accessed),
        )(uids, iids, y_t, w_t, b_col,
          user_emb.astype(jnp.float32), item_emb.astype(jnp.float32))

    prediction = out[0, :batch]                    # [batch]
    int_loss = jnp.sum(out[1, :]) / batch          # padded rows masked to 0
    return prediction, int_loss


# ----------------------------------------------------------------------------
# Pure-JAX reference for validation
# ----------------------------------------------------------------------------
def _reference_forward(x, y, user_emb, item_emb, w, b):
    u = jnp.take(user_emb, x[:, 0], axis=0)
    it = jnp.take(item_emb, x[:, 1], axis=0)
    feat = u * it
    pred = jnp.sum(feat, axis=-1)
    s = feat @ w + b
    per_sample = jnp.sum((s - y) ** 2, axis=-1)
    return pred, jnp.sum(per_sample) / x.shape[0]


if __name__ == "__main__":
    batch, hidden, num_asp = 8, 32, 8
    num_users, num_items = 16, 16

    key = jax.random.PRNGKey(0)
    k1, k2, k3, k4, k5, k6, k7 = jax.random.split(key, 7)

    # deterministic synthetic parameters
    user_emb = jax.random.normal(k1, (num_users, hidden), dtype=jnp.float32) * 0.1
    item_emb = jax.random.normal(k2, (num_items, hidden), dtype=jnp.float32) * 0.1
    w = jax.random.normal(k3, (hidden, num_asp), dtype=jnp.float32) * 0.1
    b = jax.random.normal(k4, (num_asp,), dtype=jnp.float32) * 0.1

    # inputs: x = [batch, 2] (user, item) ids; y = [batch, num_asp] genre input
    x = jnp.stack(
        [jax.random.randint(k5, (batch,), 0, num_users),
         jax.random.randint(k6, (batch,), 0, num_items)],
        axis=1).astype(jnp.int32)
    y = jax.random.bernoulli(k7, 0.5, (batch, num_asp)).astype(jnp.float32)

    pred, int_loss = interpretable_model_forward(x, y, user_emb, item_emb, w, b)
    jax.block_until_ready((pred, int_loss))

    ref_pred, ref_loss = _reference_forward(x, y, user_emb, item_emb, w, b)
    # tolerance covers MXU pass-precision / reduction-order differences
    assert jnp.allclose(pred, ref_pred, atol=1e-3, rtol=1e-3), (pred, ref_pred)
    assert jnp.allclose(int_loss, ref_loss, atol=1e-3, rtol=1e-3), (int_loss, ref_loss)

    print("KERNEL_OK")
</pallas_src>

<mosaic_0001>
module attributes {stable_mosaic.version = 11 : i64} {
  func.func @kernel(%arg0: i32, %arg1: memref<2x128xi32, #tpu.memory_space<vmem>>, %arg2: memref<8x128xf32, #tpu.memory_space<vmem>>, %arg3: memref<16x32xf32, #tpu.memory_space<vmem>>, %arg4: memref<16x1xf32, #tpu.memory_space<vmem>>, %arg5: memref<32x128xf32, #tpu.memory_space<vmem>>, %arg6: memref<32x128xf32, #tpu.memory_space<vmem>>, %arg7: memref<2x128xf32, #tpu.memory_space<vmem>>) attributes {dimension_semantics = [#tpu.dimension_semantics<parallel>], iteration_bounds = array<i64: 2>, scalar_prefetch = 0 : i64, scratch_operands = 0 : i64, tpu.core_type = #tpu.core_type<tc>, window_params = [{transform_indices = @transform_0, window_bounds = array<i64: 2, 128>}, {transform_indices = @transform_1, window_bounds = array<i64: 8, 128>}, {pipeline_mode = #tpu.pipeline_mode<synchronous>, transform_indices = @transform_2, window_bounds = array<i64: 16, 32>}, {pipeline_mode = #tpu.pipeline_mode<synchronous>, transform_indices = @transform_3, window_bounds = array<i64: 16, 1>}, {pipeline_mode = #tpu.pipeline_mode<synchronous>, transform_indices = @transform_4, window_bounds = array<i64: 32, 128>}, {pipeline_mode = #tpu.pipeline_mode<synchronous>, transform_indices = @transform_5, window_bounds = array<i64: 32, 128>}, {transform_indices = @transform_6, window_bounds = array<i64: 2, 128>}]} {
    %c0 = arith.constant 0 : index
    %c0_0 = arith.constant 0 : index
    %0 = vector.load %arg1[%c0, %c0_0] : memref<2x128xi32, #tpu.memory_space<vmem>>, vector<2x128xi32>
    %1 = vector.extract_strided_slice %0 {offsets = [0, 0], sizes = [1, 128], strides = [1, 1]} : vector<2x128xi32> to vector<1x128xi32>
    %2 = vector.extract_strided_slice %0 {offsets = [1, 0], sizes = [1, 128], strides = [1, 1]} : vector<2x128xi32> to vector<1x128xi32>
    %3 = tpu.iota {dimensions = array<i32: 0>} : vector<128x128xi32>
    %4 = vector.broadcast %1 : vector<1x128xi32> to vector<128x128xi32>
    %5 = arith.cmpi eq, %3, %4 : vector<128x128xi32>
    %6 = arith.extui %5 : vector<128x128xi1> to vector<128x128xi32>
    %7 = arith.sitofp %6 : vector<128x128xi32> to vector<128x128xf32>
    %8 = tpu.iota {dimensions = array<i32: 0>} : vector<128x128xi32>
    %9 = vector.broadcast %2 : vector<1x128xi32> to vector<128x128xi32>
    %10 = arith.cmpi eq, %8, %9 : vector<128x128xi32>
    %11 = arith.extui %10 : vector<128x128xi1> to vector<128x128xi32>
    %12 = arith.sitofp %11 : vector<128x128xi32> to vector<128x128xf32>
    %c0_1 = arith.constant 0 : index
    %c0_2 = arith.constant 0 : index
    %13 = vector.load %arg5[%c0_1, %c0_2] : memref<32x128xf32, #tpu.memory_space<vmem>>, vector<32x128xf32>
    %cst = arith.constant dense<0.000000e+00> : vector<32x128xf32>
    %14 = tpu.matmul %13, %7, %cst {dimension_numbers = #tpu.dot_dimension_numbers<[1], [0], [0], [1], [0, 0, 1, 1], [], []>} : vector<32x128xf32>, vector<128x128xf32>, vector<32x128xf32> -> vector<32x128xf32>
    %c0_3 = arith.constant 0 : index
    %c0_4 = arith.constant 0 : index
    %15 = vector.load %arg6[%c0_3, %c0_4] : memref<32x128xf32, #tpu.memory_space<vmem>>, vector<32x128xf32>
    %cst_5 = arith.constant dense<0.000000e+00> : vector<32x128xf32>
    %16 = tpu.matmul %15, %12, %cst_5 {dimension_numbers = #tpu.dot_dimension_numbers<[1], [0], [0], [1], [0, 0, 1, 1], [], []>} : vector<32x128xf32>, vector<128x128xf32>, vector<32x128xf32> -> vector<32x128xf32>
    %17 = arith.mulf %14, %16 : vector<32x128xf32>
    %c0_6 = arith.constant 0 : index
    %c0_7 = arith.constant 0 : index
    %18 = vector.load %arg2[%c0_6, %c0_7] : memref<8x128xf32, #tpu.memory_space<vmem>>, vector<8x128xf32>
    %c0_8 = arith.constant 0 : index
    %c0_9 = arith.constant 0 : index
    %19 = vector.load %arg3[%c0_8, %c0_9] : memref<16x32xf32, #tpu.memory_space<vmem>>, vector<16x32xf32>
    %c0_10 = arith.constant 0 : index
    %c0_11 = arith.constant 0 : index
    %20 = vector.load %arg4[%c0_10, %c0_11] : memref<16x1xf32, #tpu.memory_space<vmem>>, vector<16x1xf32>
    %cst_12 = arith.constant dense<0.000000e+00> : vector<16x128xf32>
    %21 = tpu.matmul %19, %17, %cst_12 {dimension_numbers = #tpu.dot_dimension_numbers<[1], [0], [0], [1], [0, 0, 1, 1], [], []>} : vector<16x32xf32>, vector<32x128xf32>, vector<16x128xf32> -> vector<16x128xf32>
    %22 = vector.broadcast %20 : vector<16x1xf32> to vector<16x128xf32>
    %23 = arith.addf %21, %22 : vector<16x128xf32>
    %24 = vector.extract_strided_slice %23 {offsets = [8, 0], sizes = [1, 128], strides = [1, 1]} : vector<16x128xf32> to vector<1x128xf32>
    %25 = vector.extract_strided_slice %23 {offsets = [0, 0], sizes = [8, 128], strides = [1, 1]} : vector<16x128xf32> to vector<8x128xf32>
    %26 = arith.subf %25, %18 : vector<8x128xf32>
    %c128_i32 = arith.constant 128 : i32
    %27 = arith.muli %arg0, %c128_i32 : i32
    %28 = tpu.iota {dimensions = array<i32: 1>} : vector<1x128xi32>
    %29 = vector.broadcast %27 : i32 to vector<1x128xi32>
    %30 = arith.addi %29, %28 : vector<1x128xi32>
    %c8_i32 = arith.constant 8 : i32
    %31 = vector.broadcast %c8_i32 : i32 to vector<1x128xi32>
    %32 = arith.cmpi slt, %30, %31 : vector<1x128xi32>
    %33 = arith.extui %32 : vector<1x128xi1> to vector<1x128xi32>
    %34 = arith.sitofp %33 : vector<1x128xi32> to vector<1x128xf32>
    %35 = arith.mulf %26, %26 : vector<8x128xf32>
    %cst_13 = arith.constant dense<0.000000e+00> : vector<128xf32>
    %36 = vector.multi_reduction <add>, %35, %cst_13 [0] : vector<8x128xf32> to vector<128xf32>
    %37 = vector.shape_cast %36 : vector<128xf32> to vector<1x128xf32>
    %38 = arith.mulf %37, %34 : vector<1x128xf32>
    %39 = tpu.concatenate %24, %38 in 0 : vector<1x128xf32>, vector<1x128xf32> -> vector<2x128xf32>
    %c0_14 = arith.constant 0 : index
    %c0_15 = arith.constant 0 : index
    %40 = vector.load %arg7[%c0_14, %c0_15] : memref<2x128xf32, #tpu.memory_space<vmem>>, vector<2x128xf32>
    tpu.vector_store %arg7[%c0_14, %c0_15], %39 {strides = array<i32>} : memref<2x128xf32, #tpu.memory_space<vmem>>, vector<2x128xf32>,
    return
  }
  func.func @transform_0(%arg0: i32) -> (i32, i32) {
    %c0_i32 = arith.constant 0 : i32
    %c0_i32_0 = arith.constant 0 : i32
    return %c0_i32, %arg0 : i32, i32
  }
  func.func @transform_1(%arg0: i32) -> (i32, i32) {
    %c0_i32 = arith.constant 0 : i32
    %c0_i32_0 = arith.constant 0 : i32
    return %c0_i32, %arg0 : i32, i32
  }
  func.func @transform_2(%arg0: i32) -> (i32, i32) {
    %c0_i32 = arith.constant 0 : i32
    %c0_i32_0 = arith.constant 0 : i32
    %c0_i32_1 = arith.constant 0 : i32
    return %c0_i32, %c0_i32_0 : i32, i32
  }
  func.func @transform_3(%arg0: i32) -> (i32, i32) {
    %c0_i32 = arith.constant 0 : i32
    %c0_i32_0 = arith.constant 0 : i32
    %c0_i32_1 = arith.constant 0 : i32
    return %c0_i32, %c0_i32_0 : i32, i32
  }
  func.func @transform_4(%arg0: i32) -> (i32, i32) {
    %c0_i32 = arith.constant 0 : i32
    %c0_i32_0 = arith.constant 0 : i32
    %c0_i32_1 = arith.constant 0 : i32
    return %c0_i32, %c0_i32_0 : i32, i32
  }
  func.func @transform_5(%arg0: i32) -> (i32, i32) {
    %c0_i32 = arith.constant 0 : i32
    %c0_i32_0 = arith.constant 0 : i32
    %c0_i32_1 = arith.constant 0 : i32
    return %c0_i32, %c0_i32_0 : i32, i32
  }
  func.func @transform_6(%arg0: i32) -> (i32, i32) {
    %c0_i32 = arith.constant 0 : i32
    %c0_i32_0 = arith.constant 0 : i32
    return %c0_i32, %arg0 : i32, i32
  }
}

</mosaic_0001>

<llo_original>
// kernel: tpu_custom_call.1
$region0: #{tpu_custom_call.1}
  #allocation0 [shape = 'u32[]', space=smem, size = 0x4, offset = 0x4, fixed_abs, tag = 'smem constant byte address 0x4 - core index']
  #allocation1 [shape = 'u32[144,128]{1,0:T(1,128)}', space=vmem, size = 0x12000, scoped, tag = 'internal scratch']
  %s0 = inlined_call_operand.hbm [shape: s32[2,256], index: 0, kind: input, shape index: {}]
  %s1 = inlined_call_operand.hbm [shape: f32[8,256], index: 1, kind: input, shape index: {}]
  %s2 = inlined_call_operand.hbm [shape: f32[16,32], index: 2, kind: input, shape index: {}]
  %s3 = inlined_call_operand.vmem [shape: f32[16,1], index: 3, kind: input, shape index: {}]
  %s4 = inlined_call_operand.vmem [shape: f32[32,128], index: 4, kind: input, shape index: {}]
  %s5 = inlined_call_operand.hbm [shape: f32[32,128], index: 5, kind: input, shape index: {}]
  %s6 = inlined_call_operand.hbm [shape: f32[2,256], index: 6, kind: output, shape index: {}]
  %s7 = sld [smem:[#allocation0]]
  $region73: #{tpu_custom_call.1} parent=0
    _
  %s9 = ssub.s32 1, %s7
  %s10 = scalar_select 0, %s9, %s7
  $region1: #{tpu_custom_call.1} parent=0
    #allocation2 [shape = 'u8[2048]{0}', space=vmem, size = 0x800, scoped, tag = 'input window, operand 0']
    #allocation3 [shape = 's32[2]{0}', space=sflag, size = 0x8, scoped, tag = 'scoped memory for tpu_custom_call.1']
    #allocation4 [shape = 's32[2]{0}', space=sflag, size = 0x8, scoped, tag = 'scoped memory for tpu_custom_call.1']
    #allocation5 [shape = 'u8[8192]{0}', space=vmem, size = 0x2000, scoped, tag = 'input window, operand 1']
    #allocation6 [shape = 's32[2]{0}', space=sflag, size = 0x8, scoped, tag = 'scoped memory for tpu_custom_call.1']
    #allocation7 [shape = 'u8[8192]{0}', space=vmem, size = 0x2000, scoped, tag = 'input window, operand 2, single buffered']
    #allocation8 [shape = 'u8[16384]{0}', space=vmem, size = 0x4000, scoped, tag = 'input window, operand 5, single buffered']
    #allocation9 [shape = 's32[1]{0}', space=sflag, size = 0x4, scoped, tag = 'scoped memory for tpu_custom_call.1']
    #allocation10 [shape = 'u8[2048]{0}', space=vmem, size = 0x800, scoped, tag = 'output window, operand 0']
    %11 = vsyncpa [#allocation3], 0
    %s12 = scalar_lea.sflag [#allocation3], 1
    %13 = vsyncpa %s12, 0
    %14 = vsyncpa [#allocation6], 0
    %s15 = scalar_lea.sflag [#allocation6], 1
    %16 = vsyncpa %s15, 0
    %17 = vsyncpa [#allocation9], 0
    %18 = vsyncpa [#allocation4], 0
    %s19 = scalar_lea.sflag [#allocation4], 1
    %20 = vsyncpa %s19, 0
    loop: start=0, step=1, limit=4
    $region2: #{tpu_custom_call.1} parent=1 // loop_pre_header
      _
    $region3: #{tpu_custom_call.1} parent=1 // loop_header
      %s22 = sphi 0, %s26
      %p23 = scmp.ge.s32.totalorder %s22, 4
      %s32 = sphi 0, %s34
      %s35 = sphi 0, %s32
      %s36 = sphi 0, %s35
      %s52 = sphi 0, %s36
      %s58 = sphi 0, %s60
      %s61 = sphi 0, %s58
      %s62 = sphi 0, %s61
      %s78 = sphi 0, %s62
      %s82 = sphi 0, %s82
      %s84 = sphi 0, %s82
      %s85 = sphi 0, %s84
      %s99 = sphi 0, %s85
      %s103 = sphi 0, %s103
      %s105 = sphi 0, %s103
      %s106 = sphi 0, %s105
      %s120 = sphi 0, %s106
      %s124 = sphi 0, %s124
      %s126 = sphi 0, %s124
      %s127 = sphi 0, %s126
      %s141 = sphi 0, %s127
      %s145 = sphi 0, %s145
      %s147 = sphi 0, %s145
      %s148 = sphi 0, %s147
      %s162 = sphi 0, %s148
      %s168 = sphi 0, %s170
      %s171 = sphi 0, %s168
      %s172 = sphi 0, %s171
      %s188 = sphi 0, %s172
    $region4: #{tpu_custom_call.1} parent=1 // loop_header_branch
      %25 = sbr.rel (%p23) target = $region8
    $region5: #{tpu_custom_call.1} parent=1 // loop_body
      %s27 = ssub.s32 %s22, 1
      %s28 = ssub.s32 %s22, 2
      %s29 = sadd.s32 %s22, 1
      %s30 = ssub.s32 %s22, %s29
      %p31 = scmp.eq.s32.totalorder %s30, 0
      %s33 = sadd.s32 %s32, 1
      %s34 = scalar_select %p31, %s32, %s33
      %p37 = pneg %p31
      %p38 = scmp.eq.s32.totalorder %s22, 1
      %p39 = por %p37, %p38
      %p40 = scmp.ne.s32.totalorder %s32, %s35
      %p41 = scmp.eq.s32.totalorder %s22, 0
      %p42 = por %p40, %p41
      %p43 = scmp.ne.s32.totalorder %s32, %s35
      %p44 = scmp.eq.s32.totalorder %s27, 1
      %p45 = por %p43, %p44
      %p46 = scmp.ne.s32.totalorder %s35, %s36
      %p47 = scmp.eq.s32.totalorder %s27, 0
      %p48 = por %p46, %p47
      %p49 = scmp.ne.s32.totalorder %s35, %s36
      %p50 = scmp.eq.s32.totalorder %s28, 1
      %p51 = por %p49, %p50
      %p53 = scmp.ne.s32.totalorder %s36, %s52
      %p54 = scmp.eq.s32.totalorder %s28, 0
      %p55 = por %p53, %p54
      %s56 = ssub.s32 %s22, %s29
      %p57 = scmp.eq.s32.totalorder %s56, 0
      %s59 = sadd.s32 %s58, 1
      %s60 = scalar_select %p57, %s58, %s59
      %p63 = pneg %p57
      %p64 = scmp.eq.s32.totalorder %s22, 1
      %p65 = por %p63, %p64
      %p66 = scmp.ne.s32.totalorder %s58, %s61
      %p67 = scmp.eq.s32.totalorder %s22, 0
      %p68 = por %p66, %p67
      %p69 = scmp.ne.s32.totalorder %s58, %s61
      %p70 = scmp.eq.s32.totalorder %s27, 1
      %p71 = por %p69, %p70
      %p72 = scmp.ne.s32.totalorder %s61, %s62
      %p73 = scmp.eq.s32.totalorder %s27, 0
      %p74 = por %p72, %p73
      %p75 = scmp.ne.s32.totalorder %s61, %s62
      %p76 = scmp.eq.s32.totalorder %s28, 1
      %p77 = por %p75, %p76
      %p79 = scmp.ne.s32.totalorder %s62, %s78
      %p80 = scmp.eq.s32.totalorder %s28, 0
      %p81 = por %p79, %p80
      %s83 = sadd.s32 %s82, 1
      %p86 = scmp.eq.s32.totalorder %s22, 1
      %p87 = scmp.ne.s32.totalorder %s82, %s84
      %p88 = scmp.eq.s32.totalorder %s22, 0
      %p89 = por %p87, %p88
      %p90 = scmp.ne.s32.totalorder %s82, %s84
      %p91 = scmp.eq.s32.totalorder %s27, 1
      %p92 = por %p90, %p91
      %p93 = scmp.ne.s32.totalorder %s84, %s85
      %p94 = scmp.eq.s32.totalorder %s27, 0
      %p95 = por %p93, %p94
      %p96 = scmp.ne.s32.totalorder %s84, %s85
      %p97 = scmp.eq.s32.totalorder %s28, 1
      %p98 = por %p96, %p97
      %p100 = scmp.ne.s32.totalorder %s85, %s99
      %p101 = scmp.eq.s32.totalorder %s28, 0
      %p102 = por %p100, %p101
      %s104 = sadd.s32 %s103, 1
      %p107 = scmp.eq.s32.totalorder %s22, 1
      %p108 = scmp.ne.s32.totalorder %s103, %s105
      %p109 = scmp.eq.s32.totalorder %s22, 0
      %p110 = por %p108, %p109
      %p111 = scmp.ne.s32.totalorder %s103, %s105
      %p112 = scmp.eq.s32.totalorder %s27, 1
      %p113 = por %p111, %p112
      %p114 = scmp.ne.s32.totalorder %s105, %s106
      %p115 = scmp.eq.s32.totalorder %s27, 0
      %p116 = por %p114, %p115
      %p117 = scmp.ne.s32.totalorder %s105, %s106
      %p118 = scmp.eq.s32.totalorder %s28, 1
      %p119 = por %p117, %p118
      %p121 = scmp.ne.s32.totalorder %s106, %s120
      %p122 = scmp.eq.s32.totalorder %s28, 0
      %p123 = por %p121, %p122
      %s125 = sadd.s32 %s124, 1
      %p128 = scmp.eq.s32.totalorder %s22, 1
      %p129 = scmp.ne.s32.totalorder %s124, %s126
      %p130 = scmp.eq.s32.totalorder %s22, 0
      %p131 = por %p129, %p130
      %p132 = scmp.ne.s32.totalorder %s124, %s126
      %p133 = scmp.eq.s32.totalorder %s27, 1
      %p134 = por %p132, %p133
      %p135 = scmp.ne.s32.totalorder %s126, %s127
      %p136 = scmp.eq.s32.totalorder %s27, 0
      %p137 = por %p135, %p136
      %p138 = scmp.ne.s32.totalorder %s126, %s127
      %p139 = scmp.eq.s32.totalorder %s28, 1
      %p140 = por %p138, %p139
      %p142 = scmp.ne.s32.totalorder %s127, %s141
      %p143 = scmp.eq.s32.totalorder %s28, 0
      %p144 = por %p142, %p143
      %s146 = sadd.s32 %s145, 1
      %p149 = scmp.eq.s32.totalorder %s22, 1
      %p150 = scmp.ne.s32.totalorder %s145, %s147
      %p151 = scmp.eq.s32.totalorder %s22, 0
      %p152 = por %p150, %p151
      %p153 = scmp.ne.s32.totalorder %s145, %s147
      %p154 = scmp.eq.s32.totalorder %s27, 1
      %p155 = por %p153, %p154
      %p156 = scmp.ne.s32.totalorder %s147, %s148
      %p157 = scmp.eq.s32.totalorder %s27, 0
      %p158 = por %p156, %p157
      %p159 = scmp.ne.s32.totalorder %s147, %s148
      %p160 = scmp.eq.s32.totalorder %s28, 1
      %p161 = por %p159, %p160
      %p163 = scmp.ne.s32.totalorder %s148, %s162
      %p164 = scmp.eq.s32.totalorder %s28, 0
      %p165 = por %p163, %p164
      %s166 = ssub.s32 %s22, %s29
      %p167 = scmp.eq.s32.totalorder %s166, 0
      %s169 = sadd.s32 %s168, 1
      %s170 = scalar_select %p167, %s168, %s169
      %p173 = pneg %p167
      %p174 = scmp.eq.s32.totalorder %s22, 1
      %p175 = por %p173, %p174
      %p176 = scmp.ne.s32.totalorder %s168, %s171
      %p177 = scmp.eq.s32.totalorder %s22, 0
      %p178 = por %p176, %p177
      %p179 = scmp.ne.s32.totalorder %s168, %s171
      %p180 = scmp.eq.s32.totalorder %s27, 1
      %p181 = por %p179, %p180
      %p182 = scmp.ne.s32.totalorder %s171, %s172
      %p183 = scmp.eq.s32.totalorder %s27, 0
      %p184 = por %p182, %p183
      %p185 = scmp.ne.s32.totalorder %s171, %s172
      %p186 = scmp.eq.s32.totalorder %s28, 1
      %p187 = por %p185, %p186
      %p189 = scmp.ne.s32.totalorder %s172, %s188
      %p190 = scmp.eq.s32.totalorder %s28, 0
      %p191 = por %p189, %p190
      %p192 = scmp.le.s32.totalorder 1, %s22
      %p193 = scmp.lt.s32.totalorder %s22, 3
      %p194 = pnand %p192, %p193
      %p195 = pneg %p194
      // Predicated region
      $region9: #{tpu_custom_call.1} parent=5 // pred_check
        _
      $region10: #{tpu_custom_call.1} parent=5 // pred_check_branch
        %197 = sbr.rel (%p194) target = $region12
      $region11: #{tpu_custom_call.1} parent=5 // pred_region
        %s198 = ssub.s32 %s22, 1
        // Predicated region
        $region13: #{tpu_custom_call.1} parent=11 // pred_check
          %p199 = pneg %p95
        $region14: #{tpu_custom_call.1} parent=11 // pred_check_branch
          %201 = sbr.rel (%p199) target = $region16
        $region15: #{tpu_custom_call.1} parent=11 // pred_region
          %s203 = ssub.s32 256, 256
          %204 = vsyncadd [#allocation6], %s203
          %s205 = sshll.u32 [#allocation7], 4
          %s206 = int_to_ptr.vmem [resolvable:$true] %s205
          %211 = dma.hbm_to_vmem [thread:$0]  %s2, 256, %s206, [#allocation6], 128, 128, 8
        $region16: #{tpu_custom_call.1} parent=11 // pred_fallthru
          _
        // Predicated region
        $region17: #{tpu_custom_call.1} parent=11 // pred_check
          %p212 = pneg %p116
        $region18: #{tpu_custom_call.1} parent=11 // pred_check_branch
          %214 = sbr.rel (%p212) target = $region20
        $region19: #{tpu_custom_call.1} parent=11 // pred_region
          _
        $region20: #{tpu_custom_call.1} parent=11 // pred_fallthru
          _
        // Predicated region
        $region21: #{tpu_custom_call.1} parent=11 // pred_check
          %p215 = pneg %p137
        $region22: #{tpu_custom_call.1} parent=11 // pred_check_branch
          %217 = sbr.rel (%p215) target = $region24
        $region23: #{tpu_custom_call.1} parent=11 // pred_region
          _
        $region24: #{tpu_custom_call.1} parent=11 // pred_fallthru
          _
        // Predicated region
        $region25: #{tpu_custom_call.1} parent=11 // pred_check
          %p218 = pneg %p158
        $region26: #{tpu_custom_call.1} parent=11 // pred_check_branch
          %220 = sbr.rel (%p218) target = $region28
        $region27: #{tpu_custom_call.1} parent=11 // pred_region
          %s222 = ssub.s32 512, 512
          %223 = vsyncadd [#allocation9], %s222
          %s224 = sshll.u32 [#allocation8], 4
          %s225 = int_to_ptr.vmem [resolvable:$true] %s224
          %230 = dma.hbm_to_vmem [thread:$0]  %s5, 512, %s225, [#allocation9], 128, 128, 8
        $region28: #{tpu_custom_call.1} parent=11 // pred_fallthru
          _
      $region12: #{tpu_custom_call.1} parent=5 // pred_fallthru
        _
      %p231 = scmp.lt.s32.totalorder %s22, 2
      // Predicated region
      $region29: #{tpu_custom_call.1} parent=5 // pred_check
        %p232 = pneg %p231
      $region30: #{tpu_custom_call.1} parent=5 // pred_check_branch
        %234 = sbr.rel (%p232) target = $region32
      $region31: #{tpu_custom_call.1} parent=5 // pred_region
        // Predicated region
        $region33: #{tpu_custom_call.1} parent=31 // pred_check
          %p235 = pneg %p42
        $region34: #{tpu_custom_call.1} parent=31 // pred_check_branch
          %237 = sbr.rel (%p235) target = $region36
        $region35: #{tpu_custom_call.1} parent=31 // pred_region
          %s238 = sand.u32 %s32, 1
          %s239 = scalar_lea.sflag [#allocation3], %s238
          %s240 = sand.u32 %s32, 1
          %s241 = smul.addr %s240, 2
          %s242 = scalar_lea.vmem [#allocation2], %s241
          %s244 = ssub.s32 32, 32
          %245 = vsyncadd %s239, %s244
          %s246 = smul.addr %s22, 32
          %s247 = scalar_lea.hbm %s0, %s246
          %s249 = sshll.u32 %s242, 4
          %s250 = int_to_ptr.vmem [resolvable:$true] %s249
          %252 = dma.hbm_to_vmem [thread:$0]  %s247, 32, %s250, %s239
        $region36: #{tpu_custom_call.1} parent=31 // pred_fallthru
          _
        // Predicated region
        $region37: #{tpu_custom_call.1} parent=31 // pred_check
          %p253 = pneg %p68
        $region38: #{tpu_custom_call.1} parent=31 // pred_check_branch
          %255 = sbr.rel (%p253) target = $region40
        $region39: #{tpu_custom_call.1} parent=31 // pred_region
          %s256 = sand.u32 %s22, 1
          %s257 = scalar_lea.sflag [#allocation6], %s256
          %s258 = sand.u32 %s58, 1
          %s259 = smul.addr %s258, 8
          %s260 = scalar_lea.vmem [#allocation5], %s259
          %s262 = ssub.s32 128, 128
          %263 = vsyncadd %s257, %s262
          %s264 = smul.addr %s22, 128
          %s265 = scalar_lea.hbm %s1, %s264
          %s267 = sshll.u32 %s260, 4
          %s268 = int_to_ptr.vmem [resolvable:$true] %s267
          %270 = dma.hbm_to_vmem [thread:$0]  %s265, 128, %s268, %s257
        $region40: #{tpu_custom_call.1} parent=31 // pred_fallthru
          _
      $region32: #{tpu_custom_call.1} parent=5 // pred_fallthru
        _
      %p271 = scmp.le.s32.totalorder 1, %s22
      %p272 = scmp.lt.s32.totalorder %s22, 3
      %p273 = pnand %p271, %p272
      %p274 = pneg %p273
      // Predicated region
      $region41: #{tpu_custom_call.1} parent=5 // pred_check
        _
      $region42: #{tpu_custom_call.1} parent=5 // pred_check_branch
        %276 = sbr.rel (%p273) target = $region44
      $region43: #{tpu_custom_call.1} parent=5 // pred_region
        %s277 = ssub.s32 %s22, 1
        %s278 = sand.u32 %s35, 1
        %s279 = scalar_lea.sflag [#allocation3], %s278
        %s280 = sand.u32 %s35, 1
        %s281 = smul.addr %s280, 2
        %s282 = scalar_lea.vmem [#allocation2], %s281
        // Predicated region
        $region45: #{tpu_custom_call.1} parent=43 // pred_check
          %p283 = pneg %p48
        $region46: #{tpu_custom_call.1} parent=43 // pred_check_branch
          %285 = sbr.rel (%p283) target = $region48
        $region47: #{tpu_custom_call.1} parent=43 // pred_region
          %286 = dma.done %s279, 32
        $region48: #{tpu_custom_call.1} parent=43 // pred_fallthru
          _
        %s287 = sand.u32 %s27, 1
        %s288 = scalar_lea.sflag [#allocation6], %s287
        %s289 = sand.u32 %s61, 1
        %s290 = smul.addr %s289, 8
        %s291 = scalar_lea.vmem [#allocation5], %s290
        // Predicated region
        $region49: #{tpu_custom_call.1} parent=43 // pred_check
          %p292 = pneg %p74
        $region50: #{tpu_custom_call.1} parent=43 // pred_check_branch
          %294 = sbr.rel (%p292) target = $region52
        $region51: #{tpu_custom_call.1} parent=43 // pred_region
          %295 = dma.done %s288, 128
        $region52: #{tpu_custom_call.1} parent=43 // pred_fallthru
          _
        // Predicated region
        $region53: #{tpu_custom_call.1} parent=43 // pred_check
          %p296 = pneg %p95
        $region54: #{tpu_custom_call.1} parent=43 // pred_check_branch
          %298 = sbr.rel (%p296) target = $region56
        $region55: #{tpu_custom_call.1} parent=43 // pred_region
          %299 = dma.done [#allocation6], 256
        $region56: #{tpu_custom_call.1} parent=43 // pred_fallthru
          _
        // Predicated region
        $region57: #{tpu_custom_call.1} parent=43 // pred_check
          %p300 = pneg %p158
        $region58: #{tpu_custom_call.1} parent=43 // pred_check_branch
          %302 = sbr.rel (%p300) target = $region60
        $region59: #{tpu_custom_call.1} parent=43 // pred_region
          %303 = dma.done [#allocation9], 512
        $region60: #{tpu_custom_call.1} parent=43 // pred_fallthru
          _
        %s304 = sand.u32 %s35, 1
        %s305 = scalar_lea.sflag [#allocation3], %s304
        %s306 = sand.u32 %s35, 1
        %s307 = smul.addr %s306, 2
        %s308 = scalar_lea.vmem [#allocation2], %s307
        %p309 = pneg %p48
        %p310 = pneg %p45
        %s311 = sand.u32 %s27, 1
        %s312 = scalar_lea.sflag [#allocation6], %s311
        %s313 = sand.u32 %s61, 1
        %s314 = smul.addr %s313, 8
        %s315 = scalar_lea.vmem [#allocation5], %s314
        %p316 = pneg %p74
        %p317 = pneg %p71
        %p318 = pneg %p95
        %p319 = pneg %p92
        %p320 = pneg %p116
        %p321 = pneg %p113
        %p322 = pneg %p137
        %p323 = pneg %p134
        %p324 = pneg %p158
        %p325 = pneg %p155
        %p326 = pneg %p184
        %p327 = pneg %p181
        %s328 = sand.u32 %s171, 1
        %s329 = scalar_lea.sflag [#allocation4], %s328
        %s330 = sand.u32 %s171, 1
        %s331 = smul.addr %s330, 2
        %s332 = scalar_lea.vmem [#allocation10], %s331
        %v333 = vld [vmem:[%s282] sm:$0x3]
        %v334 = vlaneseq
        %v335 = vshrl.u32 %v334, 7
        %v336 = vadd.s32 %v335, 8
        %v337 = vadd.s32 %v335, 16
        %v338 = vadd.s32 %v335, 24
        %v339 = vadd.s32 %v335, 32
        %v340 = vadd.s32 %v335, 40
        %v341 = vadd.s32 %v335, 48
        %v342 = vadd.s32 %v335, 56
        %v343 = vadd.s32 %v335, 64
        %v344 = vadd.s32 %v335, 72
        %v345 = vadd.s32 %v335, 80
        %v346 = vadd.s32 %v335, 88
        %v347 = vadd.s32 %v335, 96
        %v348 = vadd.s32 %v335, 104
        %v349 = vadd.s32 %v335, 112
        %v350 = vadd.s32 %v335, 120
        %v351 = vlaneseq
        %v352 = vshrl.u32 %v351, 7
        %v353 = vsub.s32 0, %v352
        %v354 = vrot.slane %v333, %v353
        %vm355 = vcmp.eq.s32.totalorder %v335, %v354
        %vm356 = vcmp.eq.s32.totalorder %v336, %v354
        %vm357 = vcmp.eq.s32.totalorder %v337, %v354
        %vm358 = vcmp.eq.s32.totalorder %v338, %v354
        %vm359 = vcmp.eq.s32.totalorder %v339, %v354
        %vm360 = vcmp.eq.s32.totalorder %v340, %v354
        %vm361 = vcmp.eq.s32.totalorder %v341, %v354
        %vm362 = vcmp.eq.s32.totalorder %v342, %v354
        %vm363 = vcmp.eq.s32.totalorder %v343, %v354
        %vm364 = vcmp.eq.s32.totalorder %v344, %v354
        %vm365 = vcmp.eq.s32.totalorder %v345, %v354
        %vm366 = vcmp.eq.s32.totalorder %v346, %v354
        %vm367 = vcmp.eq.s32.totalorder %v347, %v354
        %vm368 = vcmp.eq.s32.totalorder %v348, %v354
        %vm369 = vcmp.eq.s32.totalorder %v349, %v354
        %vm370 = vcmp.eq.s32.totalorder %v350, %v354
        %v371 = vsel %vm355, 1, 0
        %v372 = vsel %vm356, 1, 0
        %v373 = vsel %vm357, 1, 0
        %v374 = vsel %vm358, 1, 0
        %v375 = vsel %vm359, 1, 0
        %v376 = vsel %vm360, 1, 0
        %v377 = vsel %vm361, 1, 0
        %v378 = vsel %vm362, 1, 0
        %v379 = vsel %vm363, 1, 0
        %v380 = vsel %vm364, 1, 0
        %v381 = vsel %vm365, 1, 0
        %v382 = vsel %vm366, 1, 0
        %v383 = vsel %vm367, 1, 0
        %v384 = vsel %vm368, 1, 0
        %v385 = vsel %vm369, 1, 0
        %v386 = vsel %vm370, 1, 0
        %v387 = vcvt.s32.f32 %v371
        %v388 = vcvt.s32.f32 %v372
        %v389 = vcvt.s32.f32 %v373
        %v390 = vcvt.s32.f32 %v374
        %v391 = vcvt.s32.f32 %v375
        %v392 = vcvt.s32.f32 %v376
        %v393 = vcvt.s32.f32 %v377
        %v394 = vcvt.s32.f32 %v378
        %v395 = vcvt.s32.f32 %v379
        %v396 = vcvt.s32.f32 %v380
        %v397 = vcvt.s32.f32 %v381
        %v398 = vcvt.s32.f32 %v382
        %v399 = vcvt.s32.f32 %v383
        %v400 = vcvt.s32.f32 %v384
        %v401 = vcvt.s32.f32 %v385
        %v402 = vcvt.s32.f32 %v386
        %v403 = vlaneseq
        %v404 = vshrl.u32 %v403, 7
        %v405 = vsub.s32 1, %v404
        %v406 = vrot.slane %v333, %v405
        %vm407 = vcmp.eq.s32.totalorder %v335, %v406
        %vm408 = vcmp.eq.s32.totalorder %v336, %v406
        %vm409 = vcmp.eq.s32.totalorder %v337, %v406
        %vm410 = vcmp.eq.s32.totalorder %v338, %v406
        %vm411 = vcmp.eq.s32.totalorder %v339, %v406
        %vm412 = vcmp.eq.s32.totalorder %v340, %v406
        %vm413 = vcmp.eq.s32.totalorder %v341, %v406
        %vm414 = vcmp.eq.s32.totalorder %v342, %v406
        %vm415 = vcmp.eq.s32.totalorder %v343, %v406
        %vm416 = vcmp.eq.s32.totalorder %v344, %v406
        %vm417 = vcmp.eq.s32.totalorder %v345, %v406
        %vm418 = vcmp.eq.s32.totalorder %v346, %v406
        %vm419 = vcmp.eq.s32.totalorder %v347, %v406
        %vm420 = vcmp.eq.s32.totalorder %v348, %v406
        %vm421 = vcmp.eq.s32.totalorder %v349, %v406
        %vm422 = vcmp.eq.s32.totalorder %v350, %v406
        %v423 = vsel %vm407, 1, 0
        %v424 = vsel %vm408, 1, 0
        %v425 = vsel %vm409, 1, 0
        %v426 = vsel %vm410, 1, 0
        %v427 = vsel %vm411, 1, 0
        %v428 = vsel %vm412, 1, 0
        %v429 = vsel %vm413, 1, 0
        %v430 = vsel %vm414, 1, 0
        %v431 = vsel %vm415, 1, 0
        %v432 = vsel %vm416, 1, 0
        %v433 = vsel %vm417, 1, 0
        %v434 = vsel %vm418, 1, 0
        %v435 = vsel %vm419, 1, 0
        %v436 = vsel %vm420, 1, 0
        %v437 = vsel %vm421, 1, 0
        %v438 = vsel %vm422, 1, 0
        %v439 = vcvt.s32.f32 %v423
        %v440 = vcvt.s32.f32 %v424
        %v441 = vcvt.s32.f32 %v425
        %v442 = vcvt.s32.f32 %v426
        %v443 = vcvt.s32.f32 %v427
        %v444 = vcvt.s32.f32 %v428
        %v445 = vcvt.s32.f32 %v429
        %v446 = vcvt.s32.f32 %v430
        %v447 = vcvt.s32.f32 %v431
        %v448 = vcvt.s32.f32 %v432
        %v449 = vcvt.s32.f32 %v433
        %v450 = vcvt.s32.f32 %v434
        %v451 = vcvt.s32.f32 %v435
        %v452 = vcvt.s32.f32 %v436
        %v453 = vcvt.s32.f32 %v437
        %v454 = vcvt.s32.f32 %v438
        %v455 = vld [vmem:[%s4] sm:$0xff]
        %v456 = vld [vmem:[%s4 + $0x8] sm:$0xff]
        %v457 = vld [vmem:[%s4 + $0x10] sm:$0xff]
        %v458 = vld [vmem:[%s4 + $0x18] sm:$0xff]
        %459 = vmatprep.subr.mxu0 0.0
        %460 = vmatpush1.msra.mxu0 %v387
        %461 = vmatprep.subr.mxu0 0.0
        %462 = vmatpush1.msra.mxu0 %v388
        %463 = vmatprep.subr.mxu0 0.0
        %464 = vmatpush1.msra.mxu0 %v389
        %465 = vmatprep.subr.mxu0 0.0
        %466 = vmatpush1.msra.mxu0 %v390
        %467 = vmatprep.subr.mxu0 0.0
        %468 = vmatpush1.msra.mxu0 %v391
        %469 = vmatprep.subr.mxu0 0.0
        %470 = vmatpush1.msra.mxu0 %v392
        %471 = vmatprep.subr.mxu0 0.0
        %472 = vmatpush1.msra.mxu0 %v393
        %473 = vmatprep.subr.mxu0 0.0
        %474 = vmatpush1.msra.mxu0 %v394
        %475 = vmatprep.subr.mxu0 0.0
        %476 = vmatpush1.msra.mxu0 %v395
        %477 = vmatprep.subr.mxu0 0.0
        %478 = vmatpush1.msra.mxu0 %v396
        %479 = vmatprep.subr.mxu0 0.0
        %480 = vmatpush1.msra.mxu0 %v397
        %481 = vmatprep.subr.mxu0 0.0
        %482 = vmatpush1.msra.mxu0 %v398
        %483 = vmatprep.subr.mxu0 0.0
        %484 = vmatpush1.msra.mxu0 %v399
        %485 = vmatprep.subr.mxu0 0.0
        %486 = vmatpush1.msra.mxu0 %v400
        %487 = vmatprep.subr.mxu0 0.0
        %488 = vmatpush1.msra.mxu0 %v401
        %489 = vmatprep.subr.mxu0 0.0
        %490 = vmatpush1.msra.mxu0 %v402
        %491 = vmatprep.subr.mxu0 0.0
        %492 = vmatpush1.msra.mxu0 0.0
        %493 = vmatprep.subr.mxu0 0.0
        %494 = vmatpush1.msra.mxu0 0.0
        %495 = vmatprep.subr.mxu0 0.0
        %496 = vmatpush1.msra.mxu0 0.0
        %497 = vmatprep.subr.mxu0 0.0
        %498 = vmatpush1.msra.mxu0 0.0
        %499 = vmatprep.subr.mxu0 0.0
        %500 = vmatpush1.msra.mxu0 0.0
        %501 = vmatprep.subr.mxu0 0.0
        %502 = vmatpush1.msra.mxu0 0.0
        %503 = vmatprep.subr.mxu0 0.0
        %504 = vmatpush1.msra.mxu0 0.0
        %505 = vmatprep.subr.mxu0 0.0
        %506 = vmatpush1.msra.mxu0 0.0
        %507 = vmatprep.subr.mxu0 0.0
        %508 = vmatpush1.msra.mxu0 0.0
        %509 = vmatprep.subr.mxu0 0.0
        %510 = vmatpush1.msra.mxu0 0.0
        %511 = vmatprep.subr.mxu0 0.0
        %512 = vmatpush1.msra.mxu0 0.0
        %513 = vmatprep.subr.mxu0 0.0
        %514 = vmatpush1.msra.mxu0 0.0
        %515 = vmatprep.subr.mxu0 0.0
        %516 = vmatpush1.msra.mxu0 0.0
        %517 = vmatprep.subr.mxu0 0.0
        %518 = vmatpush1.msra.mxu0 0.0
        %519 = vmatprep.subr.mxu0 0.0
        %520 = vmatpush1.msra.mxu0 0.0
        %521 = vmatprep.subr.mxu0 0.0
        %522 = vmatpush1.msra.mxu0 0.0
        %523 = vmatprep.mubr.f32.mxu0 0.0
        %524 = vmatmul.mubr.f32.gmra.mrb[0].mxu0 %v455
        %v525 = vpop.f32.mrb[0].mxu0
        %v526 = vadd.f32 0.0, %v525
        %v527 = vpop.f32.mrb[0].mxu0
        %528 = vmatprep.mubr.f32.mxu0 0.0
        %529 = vmatmul.mubr.f32.gmra.mrb[0].mxu0 %v456
        %v530 = vpop.f32.mrb[0].mxu0
        %v531 = vadd.f32 0.0, %v530
        %v532 = vpop.f32.mrb[0].mxu0
        %533 = vmatprep.mubr.f32.mxu0 0.0
        %534 = vmatmul.mubr.f32.gmra.mrb[0].mxu0 %v457
        %v535 = vpop.f32.mrb[0].mxu0
        %v536 = vadd.f32 0.0, %v535
        %v537 = vpop.f32.mrb[0].mxu0
        %538 = vmatprep.mubr.f32.mxu0 0.0
        %539 = vmatmul.mubr.f32.gmra.mrb[0].mxu0 %v458
        %v540 = vpop.f32.mrb[0].mxu0
        %v541 = vadd.f32 0.0, %v540
        %v542 = vpop.f32.mrb[0].mxu0
        %543 = vdwg.mxu0
        %v544 = vld [vmem:[#allocation8] sm:$0xff]
        %v545 = vld [vmem:[#allocation8 + $0x8] sm:$0xff]
        %v546 = vld [vmem:[#allocation8 + $0x10] sm:$0xff]
        %v547 = vld [vmem:[#allocation8 + $0x18] sm:$0xff]
        %548 = vmatprep.subr.mxu0 0.0
        %549 = vmatpush1.msra.mxu0 %v439
        %550 = vmatprep.subr.mxu0 0.0
        %551 = vmatpush1.msra.mxu0 %v440
        %552 = vmatprep.subr.mxu0 0.0
        %553 = vmatpush1.msra.mxu0 %v441
        %554 = vmatprep.subr.mxu0 0.0
        %555 = vmatpush1.msra.mxu0 %v442
        %556 = vmatprep.subr.mxu0 0.0
        %557 = vmatpush1.msra.mxu0 %v443
        %558 = vmatprep.subr.mxu0 0.0
        %559 = vmatpush1.msra.mxu0 %v444
        %560 = vmatprep.subr.mxu0 0.0
        %561 = vmatpush1.msra.mxu0 %v445
        %562 = vmatprep.subr.mxu0 0.0
        %563 = vmatpush1.msra.mxu0 %v446
        %564 = vmatprep.subr.mxu0 0.0
        %565 = vmatpush1.msra.mxu0 %v447
        %566 = vmatprep.subr.mxu0 0.0
        %567 = vmatpush1.msra.mxu0 %v448
        %568 = vmatprep.subr.mxu0 0.0
        %569 = vmatpush1.msra.mxu0 %v449
        %570 = vmatprep.subr.mxu0 0.0
        %571 = vmatpush1.msra.mxu0 %v450
        %572 = vmatprep.subr.mxu0 0.0
        %573 = vmatpush1.msra.mxu0 %v451
        %574 = vmatprep.subr.mxu0 0.0
        %575 = vmatpush1.msra.mxu0 %v452
        %576 = vmatprep.subr.mxu0 0.0
        %577 = vmatpush1.msra.mxu0 %v453
        %578 = vmatprep.subr.mxu0 0.0
        %579 = vmatpush1.msra.mxu0 %v454
        %580 = vmatprep.subr.mxu0 0.0
        %581 = vmatpush1.msra.mxu0 0.0
        %582 = vmatprep.subr.mxu0 0.0
        %583 = vmatpush1.msra.mxu0 0.0
        %584 = vmatprep.subr.mxu0 0.0
        %585 = vmatpush1.msra.mxu0 0.0
        %586 = vmatprep.subr.mxu0 0.0
        %587 = vmatpush1.msra.mxu0 0.0
        %588 = vmatprep.subr.mxu0 0.0
        %589 = vmatpush1.msra.mxu0 0.0
        %590 = vmatprep.subr.mxu0 0.0
        %591 = vmatpush1.msra.mxu0 0.0
        %592 = vmatprep.subr.mxu0 0.0
        %593 = vmatpush1.msra.mxu0 0.0
        %594 = vmatprep.subr.mxu0 0.0
        %595 = vmatpush1.msra.mxu0 0.0
        %596 = vmatprep.subr.mxu0 0.0
        %597 = vmatpush1.msra.mxu0 0.0
        %598 = vmatprep.subr.mxu0 0.0
        %599 = vmatpush1.msra.mxu0 0.0
        %600 = vmatprep.subr.mxu0 0.0
        %601 = vmatpush1.msra.mxu0 0.0
        %602 = vmatprep.subr.mxu0 0.0
        %603 = vmatpush1.msra.mxu0 0.0
        %604 = vmatprep.subr.mxu0 0.0
        %605 = vmatpush1.msra.mxu0 0.0
        %606 = vmatprep.subr.mxu0 0.0
        %607 = vmatpush1.msra.mxu0 0.0
        %608 = vmatprep.subr.mxu0 0.0
        %609 = vmatpush1.msra.mxu0 0.0
        %610 = vmatprep.subr.mxu0 0.0
        %611 = vmatpush1.msra.mxu0 0.0
        %612 = vmatprep.mubr.f32.mxu0 0.0
        %613 = vmatmul.mubr.f32.gmra.mrb[0].mxu0 %v544
        %v614 = vpop.f32.mrb[0].mxu0
        %v615 = vadd.f32 0.0, %v614
        %v616 = vpop.f32.mrb[0].mxu0
        %617 = vmatprep.mubr.f32.mxu0 0.0
        %618 = vmatmul.mubr.f32.gmra.mrb[0].mxu0 %v545
        %v619 = vpop.f32.mrb[0].mxu0
        %v620 = vadd.f32 0.0, %v619
        %v621 = vpop.f32.mrb[0].mxu0
        %622 = vmatprep.mubr.f32.mxu0 0.0
        %623 = vmatmul.mubr.f32.gmra.mrb[0].mxu0 %v546
        %v624 = vpop.f32.mrb[0].mxu0
        %v625 = vadd.f32 0.0, %v624
        %v626 = vpop.f32.mrb[0].mxu0
        %627 = vmatprep.mubr.f32.mxu0 0.0
        %628 = vmatmul.mubr.f32.gmra.mrb[0].mxu0 %v547
        %v629 = vpop.f32.mrb[0].mxu0
        %v630 = vadd.f32 0.0, %v629
        %v631 = vpop.f32.mrb[0].mxu0
        %632 = vdwg.mxu0
        %v633 = vmul.f32 %v526, %v615
        %v634 = vmul.f32 %v531, %v620
        %v635 = vmul.f32 %v536, %v625
        %v636 = vmul.f32 %v541, %v630
        %v637 = vld [vmem:[%s291] sm:$0xff]
        %v638 = vld [vmem:[#allocation7] sm:$0xff]
        %v639 = vld [vmem:[#allocation7 + $0x8] sm:$0xff]
        %v640 = vld [vmem:[%s3] sm:$0xff]
        %v641 = vld [vmem:[%s3 + $0x8] sm:$0xff]
        %643 = vset.pattern.permute.xlu0 0
        %644 = vperm.xlu0 %643, %v640
        %v645 = vpop.permute.xlu0 %644
        %648 = vset.pattern.permute.xlu0 0
        %649 = vperm.xlu0 %648, %v641
        %v650 = vpop.permute.xlu0 %649
        %vm652 = vcmask 261120
        %v654 = vsel %vm652, %v638, 0
        %v657 = vsel %vm652, %v639, 0
        %659 = vmatprep.subr.mxu0 0.0
        %660 = vmatpush1.msra.mxu0 %v633
        %661 = vmatprep.subr.mxu0 0.0
        %662 = vmatpush1.msra.mxu0 %v634
        %663 = vmatprep.subr.mxu0 0.0
        %664 = vmatpush1.msra.mxu0 %v635
        %665 = vmatprep.subr.mxu0 0.0
        %666 = vmatpush1.msra.mxu0 %v636
        %667 = vmatprep.subr.mxu0 0.0
        %668 = vmatpush1.msra.mxu0 0.0
        %669 = vmatprep.subr.mxu0 0.0
        %670 = vmatpush1.msra.mxu0 0.0
        %671 = vmatprep.subr.mxu0 0.0
        %672 = vmatpush1.msra.mxu0 0.0
        %673 = vmatprep.subr.mxu0 0.0
        %674 = vmatpush1.msra.mxu0 0.0
        %675 = vmatprep.subr.mxu0 0.0
        %676 = vmatpush1.msra.mxu0 0.0
        %677 = vmatprep.subr.mxu0 0.0
        %678 = vmatpush1.msra.mxu0 0.0
        %679 = vmatprep.subr.mxu0 0.0
        %680 = vmatpush1.msra.mxu0 0.0
        %681 = vmatprep.subr.mxu0 0.0
        %682 = vmatpush1.msra.mxu0 0.0
        %683 = vmatprep.subr.mxu0 0.0
        %684 = vmatpush1.msra.mxu0 0.0
        %685 = vmatprep.subr.mxu0 0.0
        %686 = vmatpush1.msra.mxu0 0.0
        %687 = vmatprep.subr.mxu0 0.0
        %688 = vmatpush1.msra.mxu0 0.0
        %689 = vmatprep.subr.mxu0 0.0
        %690 = vmatpush1.msra.mxu0 0.0
        %691 = vmatprep.subr.mxu0 0.0
        %692 = vmatpush1.msra.mxu0 0.0
        %693 = vmatprep.subr.mxu0 0.0
        %694 = vmatpush1.msra.mxu0 0.0
        %695 = vmatprep.subr.mxu0 0.0
        %696 = vmatpush1.msra.mxu0 0.0
        %697 = vmatprep.subr.mxu0 0.0
        %698 = vmatpush1.msra.mxu0 0.0
        %699 = vmatprep.subr.mxu0 0.0
        %700 = vmatpush1.msra.mxu0 0.0
        %701 = vmatprep.subr.mxu0 0.0
        %702 = vmatpush1.msra.mxu0 0.0
        %703 = vmatprep.subr.mxu0 0.0
        %704 = vmatpush1.msra.mxu0 0.0
        %705 = vmatprep.subr.mxu0 0.0
        %706 = vmatpush1.msra.mxu0 0.0
        %707 = vmatprep.subr.mxu0 0.0
        %708 = vmatpush1.msra.mxu0 0.0
        %709 = vmatprep.subr.mxu0 0.0
        %710 = vmatpush1.msra.mxu0 0.0
        %711 = vmatprep.subr.mxu0 0.0
        %712 = vmatpush1.msra.mxu0 0.0
        %713 = vmatprep.subr.mxu0 0.0
        %714 = vmatpush1.msra.mxu0 0.0
        %715 = vmatprep.subr.mxu0 0.0
        %716 = vmatpush1.msra.mxu0 0.0
        %717 = vmatprep.subr.mxu0 0.0
        %718 = vmatpush1.msra.mxu0 0.0
        %719 = vmatprep.subr.mxu0 0.0
        %720 = vmatpush1.msra.mxu0 0.0
        %721 = vmatprep.subr.mxu0 0.0
        %722 = vmatpush1.msra.mxu0 0.0
        %723 = vmatprep.mubr.f32.mxu0 0.0
        %724 = vmatmul.mubr.f32.gmra.mrb[0].mxu0 %v654
        %v725 = vpop.f32.mrb[0].mxu0
        %v726 = vadd.f32 %v645, %v725
        %v727 = vpop.f32.mrb[0].mxu0
        %728 = vmatprep.mubr.f32.mxu0 0.0
        %729 = vmatmul.mubr.f32.gmra.mrb[0].mxu0 %v657
        %v730 = vpop.f32.mrb[0].mxu0
        %v731 = vadd.f32 %v650, %v730
        %v732 = vpop.f32.mrb[0].mxu0
        %733 = vdwg.mxu0
        %v734 = vsub.f32 %v726, %v637
        %s735 = smul.u32 %s27, 128
        %v736 = vlaneseq
        %v737 = vand.u32 %v736, 127
        %v738 = vstv %s735
        %v739 = vadd.s32 %v738, %v737
        %vm740 = vcmp.lt.s32.totalorder %v739, 8
        %v741 = vsel %vm740, 1, 0
        %v742 = vcvt.s32.f32 %v741
        %v743 = vmul.f32 %v734, %v734
        %v744 = vrot.slane %v743, 4
        %v745 = vadd.f32 %v743, %v744
        %v746 = vrot.slane %v745, 2
        %v747 = vadd.f32 %v745, %v746
        %v748 = vrot.slane %v747, 1
        %v749 = vadd.f32 %v747, %v748
        %v750 = vmul.f32 %v749, %v742
        %vm751 = vcmask 1040384
        %v752 = vsel %vm751, %v731, %v750
        %753 = vst [vmem:[%s332] sm:$0x3] %v752
        %s754 = sand.u32 %s171, 1
        %s755 = scalar_lea.sflag [#allocation4], %s754
        %s756 = sand.u32 %s171, 1
        %s757 = smul.addr %s756, 2
        %s758 = scalar_lea.vmem [#allocation10], %s757
        // Predicated region
        $region61: #{tpu_custom_call.1} parent=43 // pred_check
          %p759 = pneg %p181
        $region62: #{tpu_custom_call.1} parent=43 // pred_check_branch
          %761 = sbr.rel (%p759) target = $region64
        $region63: #{tpu_custom_call.1} parent=43 // pred_region
          %s763 = ssub.s32 32, 32
          %764 = vsyncadd %s755, %s763
          %s765 = smul.addr %s27, 32
          %s766 = scalar_lea.hbm %s6, %s765
          %s768 = sshll.u32 %s758, 4
          %s769 = int_to_ptr.vmem [resolvable:$true] %s768
          %771 = dma.vmem_to_hbm [thread:$0]  %s769, 32, %s766, %s755
        $region64: #{tpu_custom_call.1} parent=43 // pred_fallthru
          _
      $region44: #{tpu_custom_call.1} parent=5 // pred_fallthru
        _
      %p772 = scmp.le.s32.totalorder 2, %s22
      // Predicated region
      $region65: #{tpu_custom_call.1} parent=5 // pred_check
        %p773 = pneg %p772
      $region66: #{tpu_custom_call.1} parent=5 // pred_check_branch
        %775 = sbr.rel (%p773) target = $region68
      $region67: #{tpu_custom_call.1} parent=5 // pred_region
        %s776 = ssub.s32 %s22, 2
        // Predicated region
        $region69: #{tpu_custom_call.1} parent=67 // pred_check
          %p777 = pneg %p187
        $region70: #{tpu_custom_call.1} parent=67 // pred_check_branch
          %779 = sbr.rel (%p777) target = $region72
        $region71: #{tpu_custom_call.1} parent=67 // pred_region
          %s780 = sand.u32 %s172, 1
          %s781 = scalar_lea.sflag [#allocation4], %s780
          %s782 = sand.u32 %s172, 1
          %s783 = smul.addr %s782, 2
          %s784 = scalar_lea.vmem [#allocation10], %s783
          %785 = dma.done %s781, 32
        $region72: #{tpu_custom_call.1} parent=67 // pred_fallthru
          _
      $region68: #{tpu_custom_call.1} parent=5 // pred_fallthru
        _
    $region6: #{tpu_custom_call.1} parent=1 // loop_footer
      %s26 = sadd.s32 1, %s22
    $region7: #{tpu_custom_call.1} parent=1 // loop_footer_branch
      %21 = sbr.rel target = $region3
    $region8: #{tpu_custom_call.1} parent=1 // loop_exit
      _
    %786 = vsyncpa [#allocation3], 1
    %s787 = scalar_lea.sflag [#allocation3], 1
    %788 = vsyncpa %s787, 1
    %789 = vsyncpa [#allocation6], 1
    %s790 = scalar_lea.sflag [#allocation6], 1
    %791 = vsyncpa %s790, 1
    %792 = vsyncpa [#allocation9], 1
    %793 = vsyncpa [#allocation4], 1
    %s794 = scalar_lea.sflag [#allocation4], 1
    %795 = vsyncpa %s794, 1

</llo_original>
